<compile_context>
chip_gen: v6e
topology: v6e:2x2x1
jax: 0.10.0
libtpu: 0.0.40
codegen_flags: <defaults>
</compile_context>

<pallas_src>
import functools

import jax
import jax.numpy as jnp
import numpy as np
from jax.experimental import pallas as pl
from jax.experimental.pallas import tpu as pltpu


def _round_up(a, b):
    return (a + b - 1) // b * b


# --------------------------- sum / mean kernel ------------------------------

def _segsum_kernel(
    # scalar prefetch (SMEM)
    tbl_ref, nc_ref,
    # VMEM inputs
    offs_ref, lens_ref, x_ref,
    # VMEM output
    o_ref,
    # VMEM scratch
    acc_ref,
    *, mode, row_chunk, doc_block, precision,
):
    d = pl.program_id(0)          # doc-block index
    r = pl.program_id(2)          # per-block row-chunk (reduction) index
    n_r = pl.num_programs(2)

    @pl.when(r == 0)
    def _init():
        acc_ref[...] = jnp.zeros_like(acc_ref)

    # Only the first n_chunks[d] reduction steps carry new data for this block;
    # later steps re-see the same (clamped) X chunk and are skipped.
    @pl.when(r < nc_ref[d])
    def _compute():
        x = x_ref[...]                                            # (RC, TH)
        chunk_lo = tbl_ref[d * n_r + r] * row_chunk               # SMEM scalars
        # Fold chunk_lo into the (DB,1) offsets instead of the (DB,RC) iota.
        offs_local = offs_ref[...] - chunk_lo                     # (DB, 1) int32
        lens = lens_ref[...]                                      # (DB, 1) int32
        col = jax.lax.broadcasted_iota(jnp.int32, (doc_block, row_chunk), 1)
        member = (col >= offs_local) & (col < offs_local + lens)  # (DB, RC)
        acc_ref[...] += jnp.dot(
            member.astype(x.dtype), x,
            precision=precision, preferred_element_type=jnp.float32,
        )

    @pl.when(r == n_r - 1)
    def _finalize():
        acc = acc_ref[...]
        if mode == "mean":
            inv = 1.0 / jnp.maximum(lens_ref[...].astype(jnp.float32), 1.0)
            acc = acc * inv
        o_ref[...] = acc.astype(o_ref.dtype)


# ------------------------------- max kernel ---------------------------------

def _segmax_kernel(
    # scalar prefetch (SMEM)
    tbl_ref, nc_ref, offs_s_ref, lens_s_ref,
    # VMEM inputs
    lens_ref, x_ref,
    # VMEM output
    o_ref,
    # VMEM scratch
    acc_ref,
    *, row_chunk, doc_block,
):
    d = pl.program_id(0)
    r = pl.program_id(2)
    n_r = pl.num_programs(2)

    @pl.when(r == 0)
    def _init():
        acc_ref[...] = jnp.full_like(acc_ref, -jnp.inf)

    @pl.when(r < nc_ref[d])
    def _compute():
        x = x_ref[...]                                            # (RC, TH)
        chunk_lo = tbl_ref[d * n_r + r] * row_chunk
        row_ids = jax.lax.broadcasted_iota(jnp.int32, (row_chunk, 1), 0)
        neg = jnp.array(-jnp.inf, x.dtype)
        rows = []
        for j in range(doc_block):                                # unrolled
            start = offs_s_ref[d * doc_block + j] - chunk_lo      # SMEM scalars
            stop = start + lens_s_ref[d * doc_block + j]
            m = (row_ids >= start) & (row_ids < stop)             # (RC, 1)
            rows.append(jnp.max(jnp.where(m, x, neg), axis=0, keepdims=True))
        new = jnp.concatenate(rows, axis=0).astype(jnp.float32)   # (DB, TH)
        acc_ref[...] = jnp.maximum(acc_ref[...], new)

    @pl.when(r == n_r - 1)
    def _finalize():
        res = jnp.where(lens_ref[...] > 0, acc_ref[...], 0.0)     # empty doc -> 0
        o_ref[...] = res.astype(o_ref.dtype)


# -------------------------------- wrapper -----------------------------------

def pooling(x, sent_per_doc, mode="mean", precision=None, *,
            _max_rc=None, _max_db=None):
    """x: (N_total, H) float array; sent_per_doc: (n,) int segment lengths -> (n, H).

    `_max_rc` / `_max_db` are test-only knobs that cap the row-chunk and
    doc-block tile sizes (defaults are the tuned large tiles).
    """
    if mode not in ("max", "sum", "mean"):
        raise ValueError(
            f"Unknown pooling mode: {mode}. (Supported: max, sum, mean)")
    # TODO(synk): 'att' mode (AttentionPooling) is not implemented here.

    N, H = x.shape
    # The reference module moves sentPerDoc to host anyway; do the same so the
    # grid extents / chunk table can be computed statically.
    spd = np.asarray(jax.device_get(sent_per_doc)).astype(np.int64)
    n = int(spd.shape[0])

    # ---- tile sizes ------------------------------------------------------
    H_pad = _round_up(H, 128)
    if H_pad <= 1024:
        th = H_pad
    elif H_pad % 1024 == 0:
        th = 1024
    elif H_pad % 512 == 0:
        th = 512
    elif H_pad % 256 == 0:
        th = 256
    else:
        th = 128
    nh = H_pad // th

    if mode == "max":
        db = min(_max_db or 32, _round_up(n, 8))      # >=16 keeps bf16 stores dense
        rc = min(_max_rc or 512, _round_up(max(N, 1), 8))
    else:
        db = min(_max_db or 128, _round_up(n, 8))     # native v5e MXU tile
        rc = min(_max_rc or 1024, _round_up(max(N, 1), 8))
    N_pad = _round_up(max(N, 1), rc)
    n_pad = _round_up(n, db)
    nb = n_pad // db

    # ---- host-side segment metadata --------------------------------------
    lens = spd.astype(np.int32)
    offs = np.zeros(n, np.int32)
    if n > 1:
        offs[1:] = np.cumsum(lens)[:-1].astype(np.int32)
    lens_p = np.zeros(n_pad, np.int32)
    lens_p[:n] = lens
    offs_p = np.zeros(n_pad, np.int32)
    offs_p[:n] = offs
    ends_p = (offs_p + lens_p).astype(np.int64)

    blk_lo = offs_p.reshape(nb, db)[:, 0].astype(np.int64)   # first row of block
    blk_hi = ends_p.reshape(nb, db).max(axis=1)               # end row of block
    max_chunk = N_pad // rc - 1
    chunk_base = np.minimum(blk_lo // rc, max_chunk)
    n_chunks = np.clip(-(-(blk_hi - chunk_base * rc) // rc), 1,
                       max_chunk - chunk_base + 1).astype(np.int32)
    nr = int(n_chunks.max())
    # Flat (nb*nr) table of chunk indices; trailing steps repeat the last chunk
    # so the X index_map output is unchanged and Pallas skips the DMA.
    r_idx = np.arange(nr, dtype=np.int64)[None, :]
    tbl = (chunk_base[:, None]
           + np.minimum(r_idx, (n_chunks[:, None] - 1))).astype(np.int32).reshape(-1)

    # ---- device operands --------------------------------------------------
    x_p = jnp.pad(x, ((0, N_pad - N), (0, H_pad - H)))
    offs2d = jnp.asarray(offs_p.reshape(n_pad, 1))
    lens2d = jnp.asarray(lens_p.reshape(n_pad, 1))
    tbl_j = jnp.asarray(tbl)
    nc_j = jnp.asarray(n_chunks)

    if precision is None:
        precision = (jax.lax.Precision.HIGHEST
                     if x.dtype == jnp.float32 else jax.lax.Precision.DEFAULT)

    itemsize = jnp.dtype(x.dtype).itemsize
    rows_read = int(n_chunks.sum()) * rc          # rows streamed per H tile
    cost = pl.CostEstimate(
        flops=int(2 * db * rows_read * H_pad),
        transcendentals=0,
        bytes_accessed=int(rows_read * H_pad * itemsize
                           + n_pad * H_pad * itemsize),
    )
    cparams = pltpu.CompilerParams(
        dimension_semantics=("parallel", "parallel", "arbitrary"))
    out_shape = jax.ShapeDtypeStruct((n_pad, H_pad), x.dtype)

    if mode == "max":
        kernel = functools.partial(_segmax_kernel, row_chunk=rc, doc_block=db)
        grid_spec = pltpu.PrefetchScalarGridSpec(
            num_scalar_prefetch=4,        # tbl, n_chunks, offs, lens -> SMEM
            grid=(nb, nh, nr),
            in_specs=[
                pl.BlockSpec((db, 1), lambda d, h, r, tb, nc, of, ln: (d, 0)),
                pl.BlockSpec((rc, th),
                             lambda d, h, r, tb, nc, of, ln: (tb[d * nr + r], h)),
            ],
            out_specs=pl.BlockSpec((db, th),
                                   lambda d, h, r, tb, nc, of, ln: (d, h)),
            scratch_shapes=[pltpu.VMEM((db, th), jnp.float32)],
        )
        out = pl.pallas_call(
            kernel, out_shape=out_shape, grid_spec=grid_spec,
            compiler_params=cparams, cost_estimate=cost,
        )(tbl_j, nc_j, jnp.asarray(offs_p), jnp.asarray(lens_p), lens2d, x_p)
    else:
        kernel = functools.partial(_segsum_kernel, mode=mode, row_chunk=rc,
                                   doc_block=db, precision=precision)
        grid_spec = pltpu.PrefetchScalarGridSpec(
            num_scalar_prefetch=2,        # tbl, n_chunks -> SMEM
            grid=(nb, nh, nr),
            in_specs=[
                pl.BlockSpec((db, 1), lambda d, h, r, tb, nc: (d, 0)),   # offs
                pl.BlockSpec((db, 1), lambda d, h, r, tb, nc: (d, 0)),   # lens
                pl.BlockSpec((rc, th),
                             lambda d, h, r, tb, nc: (tb[d * nr + r], h)),
            ],
            out_specs=pl.BlockSpec((db, th), lambda d, h, r, tb, nc: (d, h)),
            scratch_shapes=[pltpu.VMEM((db, th), jnp.float32)],
        )
        out = pl.pallas_call(
            kernel, out_shape=out_shape, grid_spec=grid_spec,
            compiler_params=cparams, cost_estimate=cost,
        )(tbl_j, nc_j, offs2d, lens2d, x_p)

    return out[:n, :H]


# --------------------------- reference & tests ------------------------------

def _pooling_ref(x, lens, mode):
    x = np.asarray(x)
    lens = np.asarray(lens)
    out, off = [], 0
    for d in lens:
        d = int(d)
        seg = x[off:off + d]
        off += d
        if d == 0:
            out.append(np.zeros((1, x.shape[1]), x.dtype))
        elif mode == "max":
            out.append(seg.max(axis=0, keepdims=True))
        elif mode == "sum":
            out.append(seg.sum(axis=0, keepdims=True))
        else:
            out.append(seg.mean(axis=0, keepdims=True))
    return np.concatenate(out, axis=0)


if __name__ == "__main__":
    key = jax.random.PRNGKey(0)
    k1, k2 = jax.random.split(key)
    ok = True

    # Case 1: small shapes from the module spec (4 docs, H=32, one empty doc).
    spd1_np = np.array([3, 0, 5, 8], dtype=np.int32)
    spd1 = jnp.asarray(spd1_np)
    x1 = jax.random.normal(k1, (int(spd1_np.sum()), 32), dtype=jnp.float32)

    # Case 2: 20 docs, ragged lengths, non-multiple-of-128 H.
    spd2_np = np.array(
        [7, 0, 23, 40, 1, 12, 0, 9, 31, 5, 17, 3, 28, 2, 19, 11, 6, 26, 33, 4],
        dtype=np.int32,
    )
    spd2 = jnp.asarray(spd2_np)
    x2 = jax.random.normal(k2, (int(spd2_np.sum()), 200), dtype=jnp.float32)

    configs = [
        ("case1", x1, spd1, {}),
        ("case2", x2, spd2, {}),
        # Case 3: same data, tiny tile caps to exercise multiple doc blocks,
        # multiple per-block row chunks, and the clamped-chunk DMA-skip path.
        ("case3_smalltiles", x2, spd2, {"_max_rc": 64, "_max_db": 8}),
    ]

    for name, x, spd, kw in configs:
        for mode in ("max", "sum", "mean"):
            out = jax.block_until_ready(pooling(x, spd, mode=mode, **kw))
            ref = _pooling_ref(x, spd, mode)
            if out.shape != ref.shape or not np.allclose(
                np.asarray(out), ref, rtol=2e-4, atol=2e-4
            ):
                ok = False
                print(f"MISMATCH {name} mode={mode}")

    if ok:
        print("KERNEL_OK")
</pallas_src>

<mosaic_0001>
module attributes {stable_mosaic.version = 11 : i64} {
  func.func @_segmax_kernel(%arg0: i32, %arg1: i32, %arg2: i32, %arg3: memref<1xi32, #tpu.memory_space<smem>>, %arg4: memref<1xi32, #tpu.memory_space<smem>>, %arg5: memref<8xi32, #tpu.memory_space<smem>>, %arg6: memref<8xi32, #tpu.memory_space<smem>>, %arg7: memref<8x1xi32, #tpu.memory_space<vmem>>, %arg8: memref<16x128xf32, #tpu.memory_space<vmem>>, %arg9: memref<8x128xf32, #tpu.memory_space<vmem>>, %arg10: memref<8x128xf32, #tpu.memory_space<vmem>>) attributes {dimension_semantics = [#tpu.dimension_semantics<parallel>, #tpu.dimension_semantics<parallel>, #tpu.dimension_semantics<arbitrary>], iteration_bounds = array<i64: 1, 1, 1>, scalar_prefetch = 4 : i64, scratch_operands = 1 : i64, tpu.core_type = #tpu.core_type<tc>, window_params = [{transform_indices = @transform_0, window_bounds = array<i64: 8, 1>}, {transform_indices = @transform_1, window_bounds = array<i64: 16, 128>}, {transform_indices = @transform_2, window_bounds = array<i64: 8, 128>}]} {
    %c0_i32 = arith.constant 0 : i32
    %0 = arith.cmpi eq, %arg2, %c0_i32 : i32
    %1 = arith.extui %0 : i1 to i32
    %c0_i32_0 = arith.constant 0 : i32
    %2 = arith.cmpi ne, %1, %c0_i32_0 : i32
    scf.if %2 {
      %cst = arith.constant 0xFF800000 : f32
      %11 = vector.broadcast %cst : f32 to vector<8x128xf32>
      %c0 = arith.constant 0 : index
      %c0_4 = arith.constant 0 : index
      %12 = vector.load %arg10[%c0, %c0_4] : memref<8x128xf32, #tpu.memory_space<vmem>>, vector<8x128xf32>
      tpu.vector_store %arg10[%c0, %c0_4], %11 {strides = array<i32>} : memref<8x128xf32, #tpu.memory_space<vmem>>, vector<8x128xf32>,
    } else {
    }
    %3 = arith.index_cast %arg0 : i32 to index
    %4 = memref.load %arg4[%3] : memref<1xi32, #tpu.memory_space<smem>>
    %5 = arith.cmpi slt, %arg2, %4 : i32
    %6 = arith.extui %5 : i1 to i32
    %c0_i32_1 = arith.constant 0 : i32
    %7 = arith.cmpi ne, %6, %c0_i32_1 : i32
    scf.if %7 {
      %c0 = arith.constant 0 : index
      %c0_4 = arith.constant 0 : index
      %11 = vector.load %arg8[%c0, %c0_4] : memref<16x128xf32, #tpu.memory_space<vmem>>, vector<16x128xf32>
      %c1_i32 = arith.constant 1 : i32
      %12 = arith.muli %arg0, %c1_i32 : i32
      %13 = arith.addi %12, %arg2 : i32
      %14 = arith.index_cast %13 : i32 to index
      %15 = memref.load %arg3[%14] : memref<1xi32, #tpu.memory_space<smem>>
      %c16_i32 = arith.constant 16 : i32
      %16 = arith.muli %15, %c16_i32 : i32
      %17 = tpu.iota {dimensions = array<i32: 0>} : vector<16x1xi32>
      %c8_i32 = arith.constant 8 : i32
      %18 = arith.muli %arg0, %c8_i32 : i32
      %c0_i32_5 = arith.constant 0 : i32
      %19 = arith.addi %18, %c0_i32_5 : i32
      %20 = arith.index_cast %19 : i32 to index
      %21 = memref.load %arg5[%20] : memref<8xi32, #tpu.memory_space<smem>>
      %22 = arith.subi %21, %16 : i32
      %c8_i32_6 = arith.constant 8 : i32
      %23 = arith.muli %arg0, %c8_i32_6 : i32
      %c0_i32_7 = arith.constant 0 : i32
      %24 = arith.addi %23, %c0_i32_7 : i32
      %25 = arith.index_cast %24 : i32 to index
      %26 = memref.load %arg6[%25] : memref<8xi32, #tpu.memory_space<smem>>
      %27 = arith.addi %22, %26 : i32
      %28 = vector.broadcast %22 : i32 to vector<16x1xi32>
      %29 = arith.cmpi sge, %17, %28 : vector<16x1xi32>
      %30 = vector.broadcast %27 : i32 to vector<16x1xi32>
      %31 = arith.cmpi slt, %17, %30 : vector<16x1xi32>
      %32 = arith.andi %29, %31 : vector<16x1xi1>
      %cst = arith.constant 0xFF800000 : f32
      %33 = vector.shape_cast %32 : vector<16x1xi1> to vector<16x1xi1>
      %34 = vector.broadcast %33 : vector<16x1xi1> to vector<16x128xi1>
      %35 = vector.broadcast %cst : f32 to vector<16x128xf32>
      %36 = arith.select %34, %11, %35 : vector<16x128xi1>, vector<16x128xf32>
      %cst_8 = arith.constant dense<0xFF800000> : vector<128xf32>
      %37 = vector.multi_reduction <maximumf>, %36, %cst_8 [0] : vector<16x128xf32> to vector<128xf32>
      %38 = vector.shape_cast %37 : vector<128xf32> to vector<1x128xf32>
      %c8_i32_9 = arith.constant 8 : i32
      %39 = arith.muli %arg0, %c8_i32_9 : i32
      %c1_i32_10 = arith.constant 1 : i32
      %40 = arith.addi %39, %c1_i32_10 : i32
      %41 = arith.index_cast %40 : i32 to index
      %42 = memref.load %arg5[%41] : memref<8xi32, #tpu.memory_space<smem>>
      %43 = arith.subi %42, %16 : i32
      %c8_i32_11 = arith.constant 8 : i32
      %44 = arith.muli %arg0, %c8_i32_11 : i32
      %c1_i32_12 = arith.constant 1 : i32
      %45 = arith.addi %44, %c1_i32_12 : i32
      %46 = arith.index_cast %45 : i32 to index
      %47 = memref.load %arg6[%46] : memref<8xi32, #tpu.memory_space<smem>>
      %48 = arith.addi %43, %47 : i32
      %49 = vector.broadcast %43 : i32 to vector<16x1xi32>
      %50 = arith.cmpi sge, %17, %49 : vector<16x1xi32>
      %51 = vector.broadcast %48 : i32 to vector<16x1xi32>
      %52 = arith.cmpi slt, %17, %51 : vector<16x1xi32>
      %53 = arith.andi %50, %52 : vector<16x1xi1>
      %cst_13 = arith.constant 0xFF800000 : f32
      %54 = vector.shape_cast %53 : vector<16x1xi1> to vector<16x1xi1>
      %55 = vector.broadcast %54 : vector<16x1xi1> to vector<16x128xi1>
      %56 = vector.broadcast %cst_13 : f32 to vector<16x128xf32>
      %57 = arith.select %55, %11, %56 : vector<16x128xi1>, vector<16x128xf32>
      %cst_14 = arith.constant dense<0xFF800000> : vector<128xf32>
      %58 = vector.multi_reduction <maximumf>, %57, %cst_14 [0] : vector<16x128xf32> to vector<128xf32>
      %59 = vector.shape_cast %58 : vector<128xf32> to vector<1x128xf32>
      %c8_i32_15 = arith.constant 8 : i32
      %60 = arith.muli %arg0, %c8_i32_15 : i32
      %c2_i32 = arith.constant 2 : i32
      %61 = arith.addi %60, %c2_i32 : i32
      %62 = arith.index_cast %61 : i32 to index
      %63 = memref.load %arg5[%62] : memref<8xi32, #tpu.memory_space<smem>>
      %64 = arith.subi %63, %16 : i32
      %c8_i32_16 = arith.constant 8 : i32
      %65 = arith.muli %arg0, %c8_i32_16 : i32
      %c2_i32_17 = arith.constant 2 : i32
      %66 = arith.addi %65, %c2_i32_17 : i32
      %67 = arith.index_cast %66 : i32 to index
      %68 = memref.load %arg6[%67] : memref<8xi32, #tpu.memory_space<smem>>
      %69 = arith.addi %64, %68 : i32
      %70 = vector.broadcast %64 : i32 to vector<16x1xi32>
      %71 = arith.cmpi sge, %17, %70 : vector<16x1xi32>
      %72 = vector.broadcast %69 : i32 to vector<16x1xi32>
      %73 = arith.cmpi slt, %17, %72 : vector<16x1xi32>
      %74 = arith.andi %71, %73 : vector<16x1xi1>
      %cst_18 = arith.constant 0xFF800000 : f32
      %75 = vector.shape_cast %74 : vector<16x1xi1> to vector<16x1xi1>
      %76 = vector.broadcast %75 : vector<16x1xi1> to vector<16x128xi1>
      %77 = vector.broadcast %cst_18 : f32 to vector<16x128xf32>
      %78 = arith.select %76, %11, %77 : vector<16x128xi1>, vector<16x128xf32>
      %cst_19 = arith.constant dense<0xFF800000> : vector<128xf32>
      %79 = vector.multi_reduction <maximumf>, %78, %cst_19 [0] : vector<16x128xf32> to vector<128xf32>
      %80 = vector.shape_cast %79 : vector<128xf32> to vector<1x128xf32>
      %c8_i32_20 = arith.constant 8 : i32
      %81 = arith.muli %arg0, %c8_i32_20 : i32
      %c3_i32 = arith.constant 3 : i32
      %82 = arith.addi %81, %c3_i32 : i32
      %83 = arith.index_cast %82 : i32 to index
      %84 = memref.load %arg5[%83] : memref<8xi32, #tpu.memory_space<smem>>
      %85 = arith.subi %84, %16 : i32
      %c8_i32_21 = arith.constant 8 : i32
      %86 = arith.muli %arg0, %c8_i32_21 : i32
      %c3_i32_22 = arith.constant 3 : i32
      %87 = arith.addi %86, %c3_i32_22 : i32
      %88 = arith.index_cast %87 : i32 to index
      %89 = memref.load %arg6[%88] : memref<8xi32, #tpu.memory_space<smem>>
      %90 = arith.addi %85, %89 : i32
      %91 = vector.broadcast %85 : i32 to vector<16x1xi32>
      %92 = arith.cmpi sge, %17, %91 : vector<16x1xi32>
      %93 = vector.broadcast %90 : i32 to vector<16x1xi32>
      %94 = arith.cmpi slt, %17, %93 : vector<16x1xi32>
      %95 = arith.andi %92, %94 : vector<16x1xi1>
      %cst_23 = arith.constant 0xFF800000 : f32
      %96 = vector.shape_cast %95 : vector<16x1xi1> to vector<16x1xi1>
      %97 = vector.broadcast %96 : vector<16x1xi1> to vector<16x128xi1>
      %98 = vector.broadcast %cst_23 : f32 to vector<16x128xf32>
      %99 = arith.select %97, %11, %98 : vector<16x128xi1>, vector<16x128xf32>
      %cst_24 = arith.constant dense<0xFF800000> : vector<128xf32>
      %100 = vector.multi_reduction <maximumf>, %99, %cst_24 [0] : vector<16x128xf32> to vector<128xf32>
      %101 = vector.shape_cast %100 : vector<128xf32> to vector<1x128xf32>
      %c8_i32_25 = arith.constant 8 : i32
      %102 = arith.muli %arg0, %c8_i32_25 : i32
      %c4_i32 = arith.constant 4 : i32
      %103 = arith.addi %102, %c4_i32 : i32
      %104 = arith.index_cast %103 : i32 to index
      %105 = memref.load %arg5[%104] : memref<8xi32, #tpu.memory_space<smem>>
      %106 = arith.subi %105, %16 : i32
      %c8_i32_26 = arith.constant 8 : i32
      %107 = arith.muli %arg0, %c8_i32_26 : i32
      %c4_i32_27 = arith.constant 4 : i32
      %108 = arith.addi %107, %c4_i32_27 : i32
      %109 = arith.index_cast %108 : i32 to index
      %110 = memref.load %arg6[%109] : memref<8xi32, #tpu.memory_space<smem>>
      %111 = arith.addi %106, %110 : i32
      %112 = vector.broadcast %106 : i32 to vector<16x1xi32>
      %113 = arith.cmpi sge, %17, %112 : vector<16x1xi32>
      %114 = vector.broadcast %111 : i32 to vector<16x1xi32>
      %115 = arith.cmpi slt, %17, %114 : vector<16x1xi32>
      %116 = arith.andi %113, %115 : vector<16x1xi1>
      %cst_28 = arith.constant 0xFF800000 : f32
      %117 = vector.shape_cast %116 : vector<16x1xi1> to vector<16x1xi1>
      %118 = vector.broadcast %117 : vector<16x1xi1> to vector<16x128xi1>
      %119 = vector.broadcast %cst_28 : f32 to vector<16x128xf32>
      %120 = arith.select %118, %11, %119 : vector<16x128xi1>, vector<16x128xf32>
      %cst_29 = arith.constant dense<0xFF800000> : vector<128xf32>
      %121 = vector.multi_reduction <maximumf>, %120, %cst_29 [0] : vector<16x128xf32> to vector<128xf32>
      %122 = vector.shape_cast %121 : vector<128xf32> to vector<1x128xf32>
      %c8_i32_30 = arith.constant 8 : i32
      %123 = arith.muli %arg0, %c8_i32_30 : i32
      %c5_i32 = arith.constant 5 : i32
      %124 = arith.addi %123, %c5_i32 : i32
      %125 = arith.index_cast %124 : i32 to index
      %126 = memref.load %arg5[%125] : memref<8xi32, #tpu.memory_space<smem>>
      %127 = arith.subi %126, %16 : i32
      %c8_i32_31 = arith.constant 8 : i32
      %128 = arith.muli %arg0, %c8_i32_31 : i32
      %c5_i32_32 = arith.constant 5 : i32
      %129 = arith.addi %128, %c5_i32_32 : i32
      %130 = arith.index_cast %129 : i32 to index
      %131 = memref.load %arg6[%130] : memref<8xi32, #tpu.memory_space<smem>>
      %132 = arith.addi %127, %131 : i32
      %133 = vector.broadcast %127 : i32 to vector<16x1xi32>
      %134 = arith.cmpi sge, %17, %133 : vector<16x1xi32>
      %135 = vector.broadcast %132 : i32 to vector<16x1xi32>
      %136 = arith.cmpi slt, %17, %135 : vector<16x1xi32>
      %137 = arith.andi %134, %136 : vector<16x1xi1>
      %cst_33 = arith.constant 0xFF800000 : f32
      %138 = vector.shape_cast %137 : vector<16x1xi1> to vector<16x1xi1>
      %139 = vector.broadcast %138 : vector<16x1xi1> to vector<16x128xi1>
      %140 = vector.broadcast %cst_33 : f32 to vector<16x128xf32>
      %141 = arith.select %139, %11, %140 : vector<16x128xi1>, vector<16x128xf32>
      %cst_34 = arith.constant dense<0xFF800000> : vector<128xf32>
      %142 = vector.multi_reduction <maximumf>, %141, %cst_34 [0] : vector<16x128xf32> to vector<128xf32>
      %143 = vector.shape_cast %142 : vector<128xf32> to vector<1x128xf32>
      %c8_i32_35 = arith.constant 8 : i32
      %144 = arith.muli %arg0, %c8_i32_35 : i32
      %c6_i32 = arith.constant 6 : i32
      %145 = arith.addi %144, %c6_i32 : i32
      %146 = arith.index_cast %145 : i32 to index
      %147 = memref.load %arg5[%146] : memref<8xi32, #tpu.memory_space<smem>>
      %148 = arith.subi %147, %16 : i32
      %c8_i32_36 = arith.constant 8 : i32
      %149 = arith.muli %arg0, %c8_i32_36 : i32
      %c6_i32_37 = arith.constant 6 : i32
      %150 = arith.addi %149, %c6_i32_37 : i32
      %151 = arith.index_cast %150 : i32 to index
      %152 = memref.load %arg6[%151] : memref<8xi32, #tpu.memory_space<smem>>
      %153 = arith.addi %148, %152 : i32
      %154 = vector.broadcast %148 : i32 to vector<16x1xi32>
      %155 = arith.cmpi sge, %17, %154 : vector<16x1xi32>
      %156 = vector.broadcast %153 : i32 to vector<16x1xi32>
      %157 = arith.cmpi slt, %17, %156 : vector<16x1xi32>
      %158 = arith.andi %155, %157 : vector<16x1xi1>
      %cst_38 = arith.constant 0xFF800000 : f32
      %159 = vector.shape_cast %158 : vector<16x1xi1> to vector<16x1xi1>
      %160 = vector.broadcast %159 : vector<16x1xi1> to vector<16x128xi1>
      %161 = vector.broadcast %cst_38 : f32 to vector<16x128xf32>
      %162 = arith.select %160, %11, %161 : vector<16x128xi1>, vector<16x128xf32>
      %cst_39 = arith.constant dense<0xFF800000> : vector<128xf32>
      %163 = vector.multi_reduction <maximumf>, %162, %cst_39 [0] : vector<16x128xf32> to vector<128xf32>
      %164 = vector.shape_cast %163 : vector<128xf32> to vector<1x128xf32>
      %c8_i32_40 = arith.constant 8 : i32
      %165 = arith.muli %arg0, %c8_i32_40 : i32
      %c7_i32 = arith.constant 7 : i32
      %166 = arith.addi %165, %c7_i32 : i32
      %167 = arith.index_cast %166 : i32 to index
      %168 = memref.load %arg5[%167] : memref<8xi32, #tpu.memory_space<smem>>
      %169 = arith.subi %168, %16 : i32
      %c8_i32_41 = arith.constant 8 : i32
      %170 = arith.muli %arg0, %c8_i32_41 : i32
      %c7_i32_42 = arith.constant 7 : i32
      %171 = arith.addi %170, %c7_i32_42 : i32
      %172 = arith.index_cast %171 : i32 to index
      %173 = memref.load %arg6[%172] : memref<8xi32, #tpu.memory_space<smem>>
      %174 = arith.addi %169, %173 : i32
      %175 = vector.broadcast %169 : i32 to vector<16x1xi32>
      %176 = arith.cmpi sge, %17, %175 : vector<16x1xi32>
      %177 = vector.broadcast %174 : i32 to vector<16x1xi32>
      %178 = arith.cmpi slt, %17, %177 : vector<16x1xi32>
      %179 = arith.andi %176, %178 : vector<16x1xi1>
      %cst_43 = arith.constant 0xFF800000 : f32
      %180 = vector.shape_cast %179 : vector<16x1xi1> to vector<16x1xi1>
      %181 = vector.broadcast %180 : vector<16x1xi1> to vector<16x128xi1>
      %182 = vector.broadcast %cst_43 : f32 to vector<16x128xf32>
      %183 = arith.select %181, %11, %182 : vector<16x128xi1>, vector<16x128xf32>
      %cst_44 = arith.constant dense<0xFF800000> : vector<128xf32>
      %184 = vector.multi_reduction <maximumf>, %183, %cst_44 [0] : vector<16x128xf32> to vector<128xf32>
      %185 = vector.shape_cast %184 : vector<128xf32> to vector<1x128xf32>
      %186 = tpu.concatenate %38, %59, %80, %101, %122, %143, %164, %185 in 0 : vector<1x128xf32>, vector<1x128xf32>, vector<1x128xf32>, vector<1x128xf32>, vector<1x128xf32>, vector<1x128xf32>, vector<1x128xf32>, vector<1x128xf32> -> vector<8x128xf32>
      %c0_45 = arith.constant 0 : index
      %c0_46 = arith.constant 0 : index
      %187 = vector.load %arg10[%c0_45, %c0_46] : memref<8x128xf32, #tpu.memory_space<vmem>>, vector<8x128xf32>
      %188 = arith.maximumf %187, %186 : vector<8x128xf32>
      %c0_47 = arith.constant 0 : index
      %c0_48 = arith.constant 0 : index
      %189 = vector.load %arg10[%c0_47, %c0_48] : memref<8x128xf32, #tpu.memory_space<vmem>>, vector<8x128xf32>
      tpu.vector_store %arg10[%c0_47, %c0_48], %188 {strides = array<i32>} : memref<8x128xf32, #tpu.memory_space<vmem>>, vector<8x128xf32>,
    } else {
    }
    %c0_i32_2 = arith.constant 0 : i32
    %8 = arith.cmpi eq, %arg2, %c0_i32_2 : i32
    %9 = arith.extui %8 : i1 to i32
    %c0_i32_3 = arith.constant 0 : i32
    %10 = arith.cmpi ne, %9, %c0_i32_3 : i32
    scf.if %10 {
      %c0 = arith.constant 0 : index
      %c0_4 = arith.constant 0 : index
      %11 = vector.load %arg7[%c0, %c0_4] : memref<8x1xi32, #tpu.memory_space<vmem>>, vector<8x1xi32>
      %c0_i32_5 = arith.constant 0 : i32
      %12 = vector.broadcast %c0_i32_5 : i32 to vector<8x1xi32>
      %13 = arith.cmpi sgt, %11, %12 : vector<8x1xi32>
      %c0_6 = arith.constant 0 : index
      %c0_7 = arith.constant 0 : index
      %14 = vector.load %arg10[%c0_6, %c0_7] : memref<8x128xf32, #tpu.memory_space<vmem>>, vector<8x128xf32>
      %cst = arith.constant 0.000000e+00 : f32
      %15 = vector.shape_cast %13 : vector<8x1xi1> to vector<8x1xi1>
      %16 = vector.broadcast %15 : vector<8x1xi1> to vector<8x128xi1>
      %17 = vector.broadcast %cst : f32 to vector<8x128xf32>
      %18 = arith.select %16, %14, %17 : vector<8x128xi1>, vector<8x128xf32>
      %c0_8 = arith.constant 0 : index
      %c0_9 = arith.constant 0 : index
      %19 = vector.load %arg9[%c0_8, %c0_9] : memref<8x128xf32, #tpu.memory_space<vmem>>, vector<8x128xf32>
      tpu.vector_store %arg9[%c0_8, %c0_9], %18 {strides = array<i32>} : memref<8x128xf32, #tpu.memory_space<vmem>>, vector<8x128xf32>,
    } else {
    }
    return
  }
  func.func @transform_0(%arg0: i32, %arg1: i32, %arg2: i32, %arg3: memref<1xi32, #tpu.memory_space<smem>>, %arg4: memref<1xi32, #tpu.memory_space<smem>>, %arg5: memref<8xi32, #tpu.memory_space<smem>>, %arg6: memref<8xi32, #tpu.memory_space<smem>>) -> (i32, i32) {
    %c0_i32 = arith.constant 0 : i32
    %c0_i32_0 = arith.constant 0 : i32
    return %arg0, %c0_i32 : i32, i32
  }
  func.func @transform_1(%arg0: i32, %arg1: i32, %arg2: i32, %arg3: memref<1xi32, #tpu.memory_space<smem>>, %arg4: memref<1xi32, #tpu.memory_space<smem>>, %arg5: memref<8xi32, #tpu.memory_space<smem>>, %arg6: memref<8xi32, #tpu.memory_space<smem>>) -> (i32, i32) {
    %c1_i32 = arith.constant 1 : i32
    %0 = arith.muli %arg0, %c1_i32 : i32
    %1 = arith.addi %0, %arg2 : i32
    %2 = arith.index_cast %1 : i32 to index
    %3 = memref.load %arg3[%2] : memref<1xi32, #tpu.memory_space<smem>>
    %c0_i32 = arith.constant 0 : i32
    return %3, %arg1 : i32, i32
  }
  func.func @transform_2(%arg0: i32, %arg1: i32, %arg2: i32, %arg3: memref<1xi32, #tpu.memory_space<smem>>, %arg4: memref<1xi32, #tpu.memory_space<smem>>, %arg5: memref<8xi32, #tpu.memory_space<smem>>, %arg6: memref<8xi32, #tpu.memory_space<smem>>) -> (i32, i32) {
    %c0_i32 = arith.constant 0 : i32
    return %arg0, %arg1 : i32, i32
  }
}

</mosaic_0001>

<llo_original>
// kernel: tpu_custom_call.1
$region0: #{tpu_custom_call.1}
  #allocation0 [shape = 'u32[]', space=smem, size = 0x4, offset = 0x4, fixed_abs, tag = 'smem constant byte address 0x4 - core index']
  #allocation1 [shape = 'u32[144,128]{1,0:T(1,128)}', space=vmem, size = 0x12000, scoped, tag = 'internal scratch']
  #allocation2 [shape = 'f32[8,128]{1,0:T(8,128)}', space=vmem, size = 0x1000, scoped, tag = 'scratch operand']
  #allocation3 [shape = 's32[1]{0}', space=sflag, size = 0x4, scoped, tag = 'scoped memory for tpu_custom_call.1']
  #allocation4 [shape = 's32[1]{0:T(128)S(6)}', space=smem, size = 0x200, scoped, tag = 'prefetched SMEM operand 0']
  #allocation5 [shape = 's32[1]{0:T(128)S(6)}', space=smem, size = 0x200, scoped, tag = 'prefetched SMEM operand 1']
  #allocation6 [shape = 'u8[512]{0}', space=smem, size = 0x200, scoped, tag = 'prefetched SMEM operand 2']
  #allocation7 [shape = 'u8[512]{0}', space=smem, size = 0x200, scoped, tag = 'prefetched SMEM operand 3']
  %s0 = inlined_call_operand.<no memory space> [shape: s32[1], index: 0, kind: input, shape index: {}]
  %s1 = inlined_call_operand.<no memory space> [shape: s32[1], index: 1, kind: input, shape index: {}]
  %s2 = inlined_call_operand.vmem [shape: s32[8], index: 2, kind: input, shape index: {}]
  %s3 = inlined_call_operand.vmem [shape: s32[8], index: 3, kind: input, shape index: {}]
  %s4 = inlined_call_operand.vmem [shape: s32[8,1], index: 4, kind: input, shape index: {}]
  %s5 = inlined_call_operand.vmem [shape: f32[16,128], index: 5, kind: input, shape index: {}]
  %s6 = inlined_call_operand.hbm [shape: f32[8,128], index: 6, kind: output, shape index: {}]
  %s7 = sld [smem:[#allocation0]]
  $region30: #{tpu_custom_call.1} parent=0
    _
  %s9 = ssub.s32 1, %s7
  %s10 = scalar_select 0, %s9, %s7
  %11 = sst [smem:[#allocation4]] %s0
  %12 = sst [smem:[#allocation5]] %s1
  %s13 = sshll.u32 %s2, 4
  %s14 = int_to_ptr.vmem [resolvable:$true] %s13
  %16 = dma.vmem_to_smem %s14, 16, [#allocation6], [#allocation3]
  %s17 = sshll.u32 %s3, 4
  %s18 = int_to_ptr.vmem [resolvable:$true] %s17
  %20 = dma.vmem_to_smem %s18, 16, [#allocation7], [#allocation3]
  %21 = dma.done [#allocation3], 32
  %22 = sfence
  $region1: #{tpu_custom_call.1} parent=0
    #allocation8 [shape = 'u8[4096]{0}', space=vmem, size = 0x1000, scoped, tag = 'output window, operand 0, single buffered']
    #allocation9 [shape = 's32[1]{0}', space=sflag, size = 0x4, scoped, tag = 'scoped memory for tpu_custom_call.1']
    %23 = vsyncpa [#allocation9], 0
    // Predicated region
    $region2: #{tpu_custom_call.1} parent=1 // pred_check
      _
    $region3: #{tpu_custom_call.1} parent=1 // pred_check_branch
      %25 = sbr.rel (0) target = $region5
    $region4: #{tpu_custom_call.1} parent=1 // pred_region
      _
    $region5: #{tpu_custom_call.1} parent=1 // pred_fallthru
      _
    // Predicated region
    $region6: #{tpu_custom_call.1} parent=1 // pred_check
      _
    $region7: #{tpu_custom_call.1} parent=1 // pred_check_branch
      %27 = sbr.rel (0) target = $region9
    $region8: #{tpu_custom_call.1} parent=1 // pred_region
      %s28 = sadd.s32 0, 0
      %s29 = sld [smem:[#allocation4 + %s28]]
      %s30 = smul.u32 2, %s29
      %p31 = scmp.lt.s32.totalorder %s30, 1
      %s32 = scalar_select %p31, %s30, 1
      %s33 = smul.addr %s32, 8
      %s34 = scalar_lea.vmem %s5, %s33
      %s35 = sadd.s32 0, 0
      %s36 = sld [smem:[#allocation4 + %s35]]
      %s37 = smul.u32 2, %s36
    $region9: #{tpu_custom_call.1} parent=1 // pred_fallthru
      _
    %s38 = sadd.s32 0, 0
    %s39 = sld [smem:[#allocation4 + %s38]]
    %s40 = smul.u32 2, %s39
    %p41 = scmp.lt.s32.totalorder %s40, 1
    %s42 = scalar_select %p41, %s40, 1
    %s43 = smul.addr %s42, 8
    %s44 = scalar_lea.vmem %s5, %s43
    %s45 = sadd.s32 0, 0
    %s46 = sld [smem:[#allocation4 + %s45]]
    %s47 = smul.u32 2, %s46
    %p48 = scmp.lt.s32.totalorder %s47, 1
    %s49 = scalar_select %p48, %s47, 1
    %s50 = smul.addr %s49, 8
    %s51 = scalar_lea.vmem %s5, %s50
    %s52 = sadd.s32 0, 0
    %s53 = sld [smem:[#allocation4 + %s52]]
    %s54 = smul.u32 2, %s53
    %p55 = scmp.eq.s32.totalorder 0, 0
    // Predicated region
    $region10: #{tpu_custom_call.1} parent=1 // pred_check
      %p56 = pneg %p55
    $region11: #{tpu_custom_call.1} parent=1 // pred_check_branch
      %58 = sbr.rel (%p56) target = $region13
    $region12: #{tpu_custom_call.1} parent=1 // pred_region
      %59 = vst [vmem:[#allocation2] sm:$0xff] -inf
    $region13: #{tpu_custom_call.1} parent=1 // pred_fallthru
      _
    %s60 = sld [smem:[#allocation5]]
    %p61 = scmp.lt.s32.totalorder 0, %s60
    // Predicated region
    $region14: #{tpu_custom_call.1} parent=1 // pred_check
      %p62 = pneg %p61
    $region15: #{tpu_custom_call.1} parent=1 // pred_check_branch
      %64 = sbr.rel (%p62) target = $region17
    $region16: #{tpu_custom_call.1} parent=1 // pred_region
      %v65 = vld [vmem:[%s51] sm:$0xff]
      %v66 = vld [vmem:[%s51 + $0x8] sm:$0xff]
      %s67 = sadd.s32 0, 0
      %s68 = sld [smem:[#allocation4 + %s67]]
      %s69 = smul.u32 %s68, 16
      %v70 = vlaneseq
      %v71 = vshrl.u32 %v70, 7
      %v72 = vadd.s32 %v71, 8
      %s73 = smul.u32 0, 8
      %s74 = sld [smem:[#allocation6 + %s73]]
      %s75 = ssub.s32 %s74, %s69
      %s76 = sld [smem:[#allocation7 + %s73]]
      %s77 = sadd.s32 %s75, %s76
      %v78 = vstv %s75
      %vm79 = vcmp.ge.s32.totalorder %v71, %v78
      %vm80 = vcmp.ge.s32.totalorder %v72, %v78
      %v81 = vstv %s77
      %vm82 = vcmp.lt.s32.totalorder %v71, %v81
      %vm83 = vcmp.lt.s32.totalorder %v72, %v81
      %vm84 = vmand %vm79, %vm82
      %vm85 = vmand %vm80, %vm83
      %v86 = vsel %vm84, 1, 0
      %v87 = vsel %vm85, 1, 0
      %vm88 = vcmp.eq.s32.totalorder %v86, 1
      %vm89 = vcmp.eq.s32.totalorder %v87, 1
      %v90 = vsel %vm88, %v65, -inf
      %v91 = vsel %vm89, %v66, -inf
      %v92 = vmax.f32 %v90, %v91
      %v93 = vrot.slane %v92, 4
      %v94 = vmax.f32 %v92, %v93
      %v95 = vrot.slane %v94, 2
      %v96 = vmax.f32 %v94, %v95
      %v97 = vrot.slane %v96, 1
      %v98 = vmax.f32 %v96, %v97
      %s99 = sadd.s32 %s73, 1
      %s100 = sld [smem:[#allocation6 + %s99]]
      %s101 = ssub.s32 %s100, %s69
      %s102 = sld [smem:[#allocation7 + %s99]]
      %s103 = sadd.s32 %s101, %s102
      %v104 = vstv %s101
      %vm105 = vcmp.ge.s32.totalorder %v71, %v104
      %vm106 = vcmp.ge.s32.totalorder %v72, %v104
      %v107 = vstv %s103
      %vm108 = vcmp.lt.s32.totalorder %v71, %v107
      %vm109 = vcmp.lt.s32.totalorder %v72, %v107
      %vm110 = vmand %vm105, %vm108
      %vm111 = vmand %vm106, %vm109
      %v112 = vsel %vm110, 1, 0
      %v113 = vsel %vm111, 1, 0
      %vm114 = vcmp.eq.s32.totalorder %v112, 1
      %vm115 = vcmp.eq.s32.totalorder %v113, 1
      %v116 = vsel %vm114, %v65, -inf
      %v117 = vsel %vm115, %v66, -inf
      %v118 = vmax.f32 %v116, %v117
      %v119 = vrot.slane %v118, 4
      %v120 = vmax.f32 %v118, %v119
      %v121 = vrot.slane %v120, 2
      %v122 = vmax.f32 %v120, %v121
      %v123 = vrot.slane %v122, 1
      %v124 = vmax.f32 %v122, %v123
      %s125 = sadd.s32 %s73, 2
      %s126 = sld [smem:[#allocation6 + %s125]]
      %s127 = ssub.s32 %s126, %s69
      %s128 = sld [smem:[#allocation7 + %s125]]
      %s129 = sadd.s32 %s127, %s128
      %v130 = vstv %s127
      %vm131 = vcmp.ge.s32.totalorder %v71, %v130
      %vm132 = vcmp.ge.s32.totalorder %v72, %v130
      %v133 = vstv %s129
      %vm134 = vcmp.lt.s32.totalorder %v71, %v133
      %vm135 = vcmp.lt.s32.totalorder %v72, %v133
      %vm136 = vmand %vm131, %vm134
      %vm137 = vmand %vm132, %vm135
      %v138 = vsel %vm136, 1, 0
      %v139 = vsel %vm137, 1, 0
      %vm140 = vcmp.eq.s32.totalorder %v138, 1
      %vm141 = vcmp.eq.s32.totalorder %v139, 1
      %v142 = vsel %vm140, %v65, -inf
      %v143 = vsel %vm141, %v66, -inf
      %v144 = vmax.f32 %v142, %v143
      %v145 = vrot.slane %v144, 4
      %v146 = vmax.f32 %v144, %v145
      %v147 = vrot.slane %v146, 2
      %v148 = vmax.f32 %v146, %v147
      %v149 = vrot.slane %v148, 1
      %v150 = vmax.f32 %v148, %v149
      %s151 = sadd.s32 %s73, 3
      %s152 = sld [smem:[#allocation6 + %s151]]
      %s153 = ssub.s32 %s152, %s69
      %s154 = sld [smem:[#allocation7 + %s151]]
      %s155 = sadd.s32 %s153, %s154
      %v156 = vstv %s153
      %vm157 = vcmp.ge.s32.totalorder %v71, %v156
      %vm158 = vcmp.ge.s32.totalorder %v72, %v156
      %v159 = vstv %s155
      %vm160 = vcmp.lt.s32.totalorder %v71, %v159
      %vm161 = vcmp.lt.s32.totalorder %v72, %v159
      %vm162 = vmand %vm157, %vm160
      %vm163 = vmand %vm158, %vm161
      %v164 = vsel %vm162, 1, 0
      %v165 = vsel %vm163, 1, 0
      %vm166 = vcmp.eq.s32.totalorder %v164, 1
      %vm167 = vcmp.eq.s32.totalorder %v165, 1
      %v168 = vsel %vm166, %v65, -inf
      %v169 = vsel %vm167, %v66, -inf
      %v170 = vmax.f32 %v168, %v169
      %v171 = vrot.slane %v170, 4
      %v172 = vmax.f32 %v170, %v171
      %v173 = vrot.slane %v172, 2
      %v174 = vmax.f32 %v172, %v173
      %v175 = vrot.slane %v174, 1
      %v176 = vmax.f32 %v174, %v175
      %s177 = sadd.s32 %s73, 4
      %s178 = sld [smem:[#allocation6 + %s177]]
      %s179 = ssub.s32 %s178, %s69
      %s180 = sld [smem:[#allocation7 + %s177]]
      %s181 = sadd.s32 %s179, %s180
      %v182 = vstv %s179
      %vm183 = vcmp.ge.s32.totalorder %v71, %v182
      %vm184 = vcmp.ge.s32.totalorder %v72, %v182
      %v185 = vstv %s181
      %vm186 = vcmp.lt.s32.totalorder %v71, %v185
      %vm187 = vcmp.lt.s32.totalorder %v72, %v185
      %vm188 = vmand %vm183, %vm186
      %vm189 = vmand %vm184, %vm187
      %v190 = vsel %vm188, 1, 0
      %v191 = vsel %vm189, 1, 0
      %vm192 = vcmp.eq.s32.totalorder %v190, 1
      %vm193 = vcmp.eq.s32.totalorder %v191, 1
      %v194 = vsel %vm192, %v65, -inf
      %v195 = vsel %vm193, %v66, -inf
      %v196 = vmax.f32 %v194, %v195
      %v197 = vrot.slane %v196, 4
      %v198 = vmax.f32 %v196, %v197
      %v199 = vrot.slane %v198, 2
      %v200 = vmax.f32 %v198, %v199
      %v201 = vrot.slane %v200, 1
      %v202 = vmax.f32 %v200, %v201
      %s203 = sadd.s32 %s73, 5
      %s204 = sld [smem:[#allocation6 + %s203]]
      %s205 = ssub.s32 %s204, %s69
      %s206 = sld [smem:[#allocation7 + %s203]]
      %s207 = sadd.s32 %s205, %s206
      %v208 = vstv %s205
      %vm209 = vcmp.ge.s32.totalorder %v71, %v208
      %vm210 = vcmp.ge.s32.totalorder %v72, %v208
      %v211 = vstv %s207
      %vm212 = vcmp.lt.s32.totalorder %v71, %v211
      %vm213 = vcmp.lt.s32.totalorder %v72, %v211
      %vm214 = vmand %vm209, %vm212
      %vm215 = vmand %vm210, %vm213
      %v216 = vsel %vm214, 1, 0
      %v217 = vsel %vm215, 1, 0
      %vm218 = vcmp.eq.s32.totalorder %v216, 1
      %vm219 = vcmp.eq.s32.totalorder %v217, 1
      %v220 = vsel %vm218, %v65, -inf
      %v221 = vsel %vm219, %v66, -inf
      %v222 = vmax.f32 %v220, %v221
      %v223 = vrot.slane %v222, 4
      %v224 = vmax.f32 %v222, %v223
      %v225 = vrot.slane %v224, 2
      %v226 = vmax.f32 %v224, %v225
      %v227 = vrot.slane %v226, 1
      %v228 = vmax.f32 %v226, %v227
      %s229 = sadd.s32 %s73, 6
      %s230 = sld [smem:[#allocation6 + %s229]]
      %s231 = ssub.s32 %s230, %s69
      %s232 = sld [smem:[#allocation7 + %s229]]
      %s233 = sadd.s32 %s231, %s232
      %v234 = vstv %s231
      %vm235 = vcmp.ge.s32.totalorder %v71, %v234
      %vm236 = vcmp.ge.s32.totalorder %v72, %v234
      %v237 = vstv %s233
      %vm238 = vcmp.lt.s32.totalorder %v71, %v237
      %vm239 = vcmp.lt.s32.totalorder %v72, %v237
      %vm240 = vmand %vm235, %vm238
      %vm241 = vmand %vm236, %vm239
      %v242 = vsel %vm240, 1, 0
      %v243 = vsel %vm241, 1, 0
      %vm244 = vcmp.eq.s32.totalorder %v242, 1
      %vm245 = vcmp.eq.s32.totalorder %v243, 1
      %v246 = vsel %vm244, %v65, -inf
      %v247 = vsel %vm245, %v66, -inf
      %v248 = vmax.f32 %v246, %v247
      %v249 = vrot.slane %v248, 4
      %v250 = vmax.f32 %v248, %v249
      %v251 = vrot.slane %v250, 2
      %v252 = vmax.f32 %v250, %v251
      %v253 = vrot.slane %v252, 1
      %v254 = vmax.f32 %v252, %v253
      %s255 = sadd.s32 %s73, 7
      %s256 = sld [smem:[#allocation6 + %s255]]
      %s257 = ssub.s32 %s256, %s69
      %s258 = sld [smem:[#allocation7 + %s255]]
      %s259 = sadd.s32 %s257, %s258
      %v260 = vstv %s257
      %vm261 = vcmp.ge.s32.totalorder %v71, %v260
      %vm262 = vcmp.ge.s32.totalorder %v72, %v260
      %v263 = vstv %s259
      %vm264 = vcmp.lt.s32.totalorder %v71, %v263
      %vm265 = vcmp.lt.s32.totalorder %v72, %v263
      %vm266 = vmand %vm261, %vm264
      %vm267 = vmand %vm262, %vm265
      %v268 = vsel %vm266, 1, 0
      %v269 = vsel %vm267, 1, 0
      %vm270 = vcmp.eq.s32.totalorder %v268, 1
      %vm271 = vcmp.eq.s32.totalorder %v269, 1
      %v272 = vsel %vm270, %v65, -inf
      %v273 = vsel %vm271, %v66, -inf
      %v274 = vmax.f32 %v272, %v273
      %v275 = vrot.slane %v274, 4
      %v276 = vmax.f32 %v274, %v275
      %v277 = vrot.slane %v276, 2
      %v278 = vmax.f32 %v276, %v277
      %v279 = vrot.slane %v278, 1
      %v280 = vmax.f32 %v278, %v279
      %vm281 = vcmask 1040384
      %v282 = vsel %vm281, %v98, %v124
      %vm283 = vcmask 1041408
      %v284 = vsel %vm283, %v282, %v150
      %vm285 = vcmask 1042432
      %v286 = vsel %vm285, %v284, %v176
      %vm287 = vcmask 1043456
      %v288 = vsel %vm287, %v286, %v202
      %vm289 = vcmask 1044480
      %v290 = vsel %vm289, %v288, %v228
      %vm291 = vcmask 1045504
      %v292 = vsel %vm291, %v290, %v254
      %vm293 = vcmask 1046528
      %v294 = vsel %vm293, %v292, %v280
      %v295 = vld [vmem:[#allocation2] sm:$0xff]
      %v296 = vmax.f32 %v295, %v294
      %297 = vst [vmem:[#allocation2] sm:$0xff] %v296
    $region17: #{tpu_custom_call.1} parent=1 // pred_fallthru
      _
    // Predicated region
    $region18: #{tpu_custom_call.1} parent=1 // pred_check
      %p298 = pneg %p55
    $region19: #{tpu_custom_call.1} parent=1 // pred_check_branch
      %300 = sbr.rel (%p298) target = $region21
    $region20: #{tpu_custom_call.1} parent=1 // pred_region
      %v301 = vld [vmem:[%s4] sm:$0xff]
      %vm302 = vcmp.gt.s32.totalorder %v301, 0
      %v303 = vld [vmem:[#allocation2] sm:$0xff]
      %v304 = vsel %vm302, 1, 0
      %305 = vset.pattern.permute.xlu0 0
      %306 = vperm.xlu0 %305, %v304
      %v307 = vpop.permute.xlu0 %306
      %vm308 = vcmp.eq.s32.totalorder %v307, 1
      %v309 = vsel %vm308, %v303, 0.0
      %310 = vst [vmem:[#allocation8] sm:$0xff] %v309
    $region21: #{tpu_custom_call.1} parent=1 // pred_fallthru
      _
    // Predicated region
    $region22: #{tpu_custom_call.1} parent=1 // pred_check
      _
    $region23: #{tpu_custom_call.1} parent=1 // pred_check_branch
      %312 = sbr.rel (0) target = $region25
    $region24: #{tpu_custom_call.1} parent=1 // pred_region
      %s314 = ssub.s32 128, 128
      %315 = vsyncadd [#allocation9], %s314
      %s317 = sshll.u32 [#allocation8], 4
      %s318 = int_to_ptr.vmem [resolvable:$true] %s317
      %320 = dma.vmem_to_hbm [thread:$0]  %s318, 128, %s6, [#allocation9]
    $region25: #{tpu_custom_call.1} parent=1 // pred_fallthru
      _
    // Predicated region
    $region26: #{tpu_custom_call.1} parent=1 // pred_check
      _
    $region27: #{tpu_custom_call.1} parent=1 // pred_check_branch
      %322 = sbr.rel (0) target = $region29
    $region28: #{tpu_custom_call.1} parent=1 // pred_region
      %323 = dma.done [#allocation9], 128
    $region29: #{tpu_custom_call.1} parent=1 // pred_fallthru
      _
    %324 = vsyncpa [#allocation9], 1

</llo_original>
